<compile_context>
chip_gen: v7x
topology: tpu7x:2x2x1
jax: 0.10.0
libtpu: 0.0.40
codegen_flags: <defaults>
</compile_context>

<pallas_src>
import functools

import jax
import jax.numpy as jnp
from jax.experimental import pallas as pl
from jax.experimental.pallas import tpu as pltpu

EPS = 1e-5                       # torch.nn.BatchNorm2d default eps


def _vmem_budgets():
    """Generation-aware scoped-VMEM limit and per-tile byte budget."""
    vmem_phys = 64 * 1024 * 1024          # conservative default (v7x per-core)
    try:
        info = pltpu.get_tpu_info()
        for name in ("vmem_capacity_bytes", "vmem_size_bytes", "vmem_bytes"):
            v = getattr(info, name, None)
            if v:
                vmem_phys = int(v)
                break
    except Exception:
        pass
    limit = min(vmem_phys * 3 // 4, 96 * 1024 * 1024)   # 96MiB on v5e/v6e, 48MiB on v7x
    tile_budget = max(4 * 1024 * 1024, limit // 6)
    return limit, tile_budget


_VMEM_LIMIT, _TILE_BUDGET = _vmem_budgets()


def _pick_tile_rows(m, row_bytes, budget):
    """Row tile for a (m, cols) array.

    Prefers the largest multiple-of-8 divisor of m that fits the per-tile VMEM
    budget (double-buffering already folded into row_bytes by the caller); if
    no divisor exists, pads m up to a multiple of the tile (caller masks).
    Returns (tile_rows, padded_m)."""
    max_rows = (budget // max(row_bytes, 1)) // 8 * 8
    max_rows = max(8, min(max_rows, 4096))
    if m <= max_rows:
        return m, m                             # single full-extent block
    for t in range(max_rows, 7, -8):
        if m % t == 0:
            return t, m
    t = max_rows
    return t, ((m + t - 1) // t) * t


def _pick_rep(m, k, c):
    """Row-packing factor making the 1x1-conv output lane-dense (Cout*rep=128)."""
    if c >= 128 or 128 % c != 0:
        return 1
    rep = 128 // c
    while rep > 1 and (m % rep != 0 or rep * k > 4096):
        rep //= 2
    return rep


# ---------------------------------------------------------------------------
# Kernel 1: 1x1 conv as matmul, fused BN-affine(+ReLU) prologue + stats epilogue
# ---------------------------------------------------------------------------

def _conv1x1_kernel(x_ref, w_ref, s_ref, t_ref, y_ref, sum_ref, ssq_ref, *,
                    prologue, relu, compute_dtype, valid_rows, tm):
    i = pl.program_id(1)

    @pl.when(i == 0)
    def _():
        sum_ref[...] = jnp.zeros_like(sum_ref)
        ssq_ref[...] = jnp.zeros_like(ssq_ref)

    x = x_ref[...]
    if prologue:                                  # previous layer's BN + ReLU
        x = x.astype(jnp.float32) * s_ref[...] + t_ref[...]
        if relu:
            x = jnp.maximum(x, 0.0)
    y = jnp.dot(x.astype(compute_dtype), w_ref[...],
                preferred_element_type=jnp.float32)
    y_ref[...] = y.astype(y_ref.dtype)

    ym = y
    if valid_rows is not None:                    # mask padded tail rows (stats)
        row0 = (pl.program_id(0) * pl.num_programs(1) + i) * tm
        rid = row0 + jax.lax.broadcasted_iota(jnp.int32, y.shape, 0)
        ym = jnp.where(rid < valid_rows, y, 0.0)
    # training-mode BN batch statistics (resident accumulator outputs; the
    # (1, C) partial broadcasts over the 8-row stats block)
    sum_ref[...] = sum_ref[...] + jnp.sum(ym, axis=0, keepdims=True)
    ssq_ref[...] = ssq_ref[...] + jnp.sum(ym * ym, axis=0, keepdims=True)


def conv1x1_bn_stats(x2d, w, prologue_scale=None, prologue_shift=None,
                     prologue_relu=True, compute_dtype=jnp.bfloat16):
    """(M, K) @ (K, C) with optional fused input affine+ReLU; also returns the
    per-channel sum and sum-of-squares of the output (for the following BN).
    Output activations are stored in compute_dtype."""
    M, K = x2d.shape
    C = w.shape[1]
    has_pro = prologue_scale is not None

    # lane-dense packing: rep pixels per packed row, block-diagonal weight
    rep = _pick_rep(M, K, C)
    Mr, Kp, Cp = M // rep, K * rep, C * rep
    xp = x2d.reshape(Mr, Kp)
    wp = jnp.kron(jnp.eye(rep, dtype=w.dtype), w) if rep > 1 else w
    if has_pro:
        scale = jnp.tile(prologue_scale.astype(jnp.float32), rep).reshape(1, Kp)
        shift = jnp.tile(prologue_shift.astype(jnp.float32), rep).reshape(1, Kp)
    else:
        scale = jnp.ones((1, Kp), jnp.float32)
        shift = jnp.zeros((1, Kp), jnp.float32)

    in_b = jnp.dtype(xp.dtype).itemsize
    out_b = jnp.dtype(compute_dtype).itemsize
    w_bytes = 2 * Kp * Cp * out_b
    tm, Mp = _pick_tile_rows(Mr, 2 * Kp * in_b + 2 * Cp * out_b,
                             max(_TILE_BUDGET - w_bytes, 1 << 20))
    if Mp != Mr:
        xp = jnp.pad(xp, ((0, Mp - Mr), (0, 0)))
    valid = Mr if Mp != Mr else None

    n_blocks = Mp // tm
    n_par = 2 if (n_blocks % 2 == 0 and n_blocks >= 2) else 1
    n_inner = n_blocks // n_par

    kernel = functools.partial(_conv1x1_kernel, prologue=has_pro,
                               relu=prologue_relu, compute_dtype=compute_dtype,
                               valid_rows=valid, tm=tm)
    y, s, ss = pl.pallas_call(
        kernel,
        out_shape=(jax.ShapeDtypeStruct((Mp, Cp), compute_dtype),
                   jax.ShapeDtypeStruct((n_par * 8, Cp), jnp.float32),
                   jax.ShapeDtypeStruct((n_par * 8, Cp), jnp.float32)),
        grid_spec=pltpu.PrefetchScalarGridSpec(
            num_scalar_prefetch=0,
            grid=(n_par, n_inner),
            in_specs=[
                pl.BlockSpec((tm, Kp), lambda c, i: (c * n_inner + i, 0)),
                pl.BlockSpec((Kp, Cp), lambda c, i: (0, 0)),
                pl.BlockSpec((1, Kp), lambda c, i: (0, 0)),
                pl.BlockSpec((1, Kp), lambda c, i: (0, 0)),
            ],
            out_specs=[pl.BlockSpec((tm, Cp), lambda c, i: (c * n_inner + i, 0)),
                       pl.BlockSpec((8, Cp), lambda c, i: (c, 0)),
                       pl.BlockSpec((8, Cp), lambda c, i: (c, 0))],
        ),
        compiler_params=pltpu.CompilerParams(
            dimension_semantics=("parallel", "arbitrary"),
            vmem_limit_bytes=_VMEM_LIMIT),
    )(xp, wp.astype(compute_dtype), scale, shift)

    y = y[:Mr].reshape(M, C)
    s_tot = s.reshape(n_par, 8, Cp)[:, 0, :].sum(axis=0).reshape(rep, C).sum(axis=0)
    ss_tot = ss.reshape(n_par, 8, Cp)[:, 0, :].sum(axis=0).reshape(rep, C).sum(axis=0)
    return y, s_tot, ss_tot


# ---------------------------------------------------------------------------
# Kernel 2: fused 3x3 conv (pad 1, any stride): bn1-affine+ReLU prologue written
#           into a zero-initialized padded VMEM scratch, kw taps folded into the
#           contraction (3 matmuls), BN stats epilogue.
# ---------------------------------------------------------------------------

def _conv3x3_kernel(x_ref, s_ref, t_ref, w_ref, y_ref, sum_ref, ssq_ref, zbuf,
                    *, H, W, Ho, Wo, stride, compute_dtype):
    i = pl.program_id(1)

    @pl.when(i == 0)
    def _():
        sum_ref[...] = jnp.zeros_like(sum_ref)
        ssq_ref[...] = jnp.zeros_like(ssq_ref)
        zbuf[...] = jnp.zeros_like(zbuf)        # zero-padding ring stays zero

    # bn1 affine + ReLU prologue, written into the interior of the padded buffer
    x = x_ref[0].astype(jnp.float32)                       # (H, W, Cin)
    z = jnp.maximum(x * s_ref[...] + t_ref[...], 0.0)
    zbuf[1:H + 1, 1:W + 1, :] = z.astype(zbuf.dtype)

    cin = x.shape[-1]
    cout = y_ref.shape[-1]
    rext = (Ho - 1) * stride + 1
    cext = (Wo - 1) * stride + 1
    acc = jnp.zeros((Ho * Wo, cout), jnp.float32)
    for kh in range(3):
        taps = []
        for kw in range(3):
            win = zbuf[kh:kh + rext, kw:kw + cext, :]      # ref window slice
            if stride > 1:
                win = win[::stride, ::stride, :]
            taps.append(win)                               # (Ho, Wo, Cin)
        lhs = jnp.concatenate(taps, axis=-1).reshape(Ho * Wo, 3 * cin)
        acc = acc + jnp.dot(lhs.astype(compute_dtype), w_ref[kh],
                            preferred_element_type=jnp.float32)
    y_ref[0] = acc.astype(y_ref.dtype)

    sum_ref[...] = sum_ref[...] + jnp.sum(acc, axis=0, keepdims=True)
    ssq_ref[...] = ssq_ref[...] + jnp.sum(acc * acc, axis=0, keepdims=True)


def conv3x3_fused(y1_4d, scale, shift, w_3kk, stride=1,
                  compute_dtype=jnp.bfloat16):
    """3x3 / pad 1 / any-stride conv fused with the preceding BN affine + ReLU.
    One image per grid step (no wrapper-side pad / mask arrays).
    TODO(synk): halo-tiled spatial blocking for activations too large for VMEM."""
    N, H, W, Cin = y1_4d.shape
    Cout = w_3kk.shape[-1]
    Ho = (H + 2 - 3) // stride + 1
    Wo = (W + 2 - 3) // stride + 1
    n_par = 2 if (N % 2 == 0 and N >= 2) else 1
    n_inner = N // n_par
    kernel = functools.partial(_conv3x3_kernel, H=H, W=W, Ho=Ho, Wo=Wo,
                               stride=stride, compute_dtype=compute_dtype)
    y, s, ss = pl.pallas_call(
        kernel,
        out_shape=(jax.ShapeDtypeStruct((N, Ho * Wo, Cout), compute_dtype),
                   jax.ShapeDtypeStruct((n_par * 8, Cout), jnp.float32),
                   jax.ShapeDtypeStruct((n_par * 8, Cout), jnp.float32)),
        grid_spec=pltpu.PrefetchScalarGridSpec(
            num_scalar_prefetch=0,
            grid=(n_par, n_inner),
            in_specs=[
                pl.BlockSpec((1, H, W, Cin), lambda c, i: (c * n_inner + i, 0, 0, 0)),
                pl.BlockSpec((1, Cin), lambda c, i: (0, 0)),
                pl.BlockSpec((1, Cin), lambda c, i: (0, 0)),
                pl.BlockSpec((3, 3 * Cin, Cout), lambda c, i: (0, 0, 0)),
            ],
            out_specs=[
                pl.BlockSpec((1, Ho * Wo, Cout), lambda c, i: (c * n_inner + i, 0, 0)),
                pl.BlockSpec((8, Cout), lambda c, i: (c, 0)),
                pl.BlockSpec((8, Cout), lambda c, i: (c, 0)),
            ],
            scratch_shapes=[pltpu.VMEM((H + 2, W + 2, Cin), compute_dtype)],
        ),
        compiler_params=pltpu.CompilerParams(
            dimension_semantics=("parallel", "arbitrary"),
            vmem_limit_bytes=_VMEM_LIMIT),
    )(y1_4d, scale.reshape(1, Cin).astype(jnp.float32),
      shift.reshape(1, Cin).astype(jnp.float32), w_3kk.astype(compute_dtype))
    # TODO(synk): lane-dense repack of the (Ho*Wo, Cout<128) store.
    s_tot = s.reshape(n_par, 8, Cout)[:, 0, :].sum(axis=0)
    ss_tot = ss.reshape(n_par, 8, Cout)[:, 0, :].sum(axis=0)
    return y.reshape(N * Ho * Wo, Cout), s_tot, ss_tot, Ho, Wo


# ---------------------------------------------------------------------------
# Kernel 3: bn3 affine + shortcut-bn affine + residual add + ReLU (lane-dense)
# ---------------------------------------------------------------------------

def _bn_add_relu_kernel(y_ref, s_ref, t_ref, r_ref, rs_ref, rt_ref, o_ref, *,
                        residual_affine):
    v = y_ref[...].astype(jnp.float32) * s_ref[...] + t_ref[...]
    r = r_ref[...].astype(jnp.float32)
    if residual_affine:
        r = r * rs_ref[...] + rt_ref[...]
    o_ref[...] = jnp.maximum(v + r, 0.0).astype(o_ref.dtype)


def bn_add_relu(y, scale, shift, res, res_scale=None, res_shift=None,
                out_dtype=jnp.float32):
    """out = relu(bn3(y) + [bn_s(res) | res]) in a single lane-dense pass."""
    M, C = y.shape
    residual_affine = res_scale is not None
    if not residual_affine:
        res_scale = jnp.ones((C,), jnp.float32)
        res_shift = jnp.zeros((C,), jnp.float32)
    rep = 1
    if C < 128 and 128 % C == 0 and M % (128 // C) == 0:
        rep = 128 // C
    Mr, Cp = M // rep, C * rep
    tile_vec = lambda v: jnp.tile(v.astype(jnp.float32).reshape(1, C), (1, rep))
    yb = jnp.dtype(y.dtype).itemsize
    rb = jnp.dtype(res.dtype).itemsize
    ob = jnp.dtype(out_dtype).itemsize
    tm, Mp = _pick_tile_rows(Mr, 2 * Cp * (yb + rb + ob), _TILE_BUDGET)
    y2 = y.reshape(Mr, Cp)
    r2 = res.reshape(Mr, Cp)
    if Mp != Mr:
        y2 = jnp.pad(y2, ((0, Mp - Mr), (0, 0)))
        r2 = jnp.pad(r2, ((0, Mp - Mr), (0, 0)))
    kernel = functools.partial(_bn_add_relu_kernel,
                               residual_affine=residual_affine)
    row = pl.BlockSpec((tm, Cp), lambda i: (i, 0))
    vec = pl.BlockSpec((1, Cp), lambda i: (0, 0))
    out = pl.pallas_call(
        kernel,
        out_shape=jax.ShapeDtypeStruct((Mp, Cp), out_dtype),
        grid_spec=pltpu.PrefetchScalarGridSpec(
            num_scalar_prefetch=0,
            grid=(Mp // tm,),
            in_specs=[row, vec, vec, row, vec, vec],
            out_specs=row,
        ),
        compiler_params=pltpu.CompilerParams(
            dimension_semantics=("parallel",),
            vmem_limit_bytes=_VMEM_LIMIT),
    )(y2, tile_vec(scale), tile_vec(shift), r2,
      tile_vec(res_scale), tile_vec(res_shift))
    return out[:Mr].reshape(M, C)


# ------------------------------ glue (tiny, JAX) ----------------------------

def _bn_scale_shift(s, ss, count, gamma, beta):
    """Training-mode BN affine from in-kernel (sum, sum-of-squares) stats."""
    mean = s / count
    var = jnp.maximum(ss / count - mean * mean, 0.0)   # biased, like torch BN
    scale = gamma / jnp.sqrt(var + EPS)
    shift = beta - mean * scale
    return scale, shift


def init_params(key, in_planes, planes):
    expansion = 4 * planes
    ks = jax.random.split(key, 16)
    w = lambda k, s: 0.5 * jax.random.normal(k, s, jnp.float32)
    g = lambda k, n: 1.0 + 0.1 * jax.random.normal(k, (n,), jnp.float32)
    return {
        # torch layouts: conv weight (out, in, kh, kw)
        "w1": w(ks[0], (planes, in_planes, 1, 1)), "b1": w(ks[1], (planes,)),
        "g1": g(ks[2], planes), "be1": w(ks[3], (planes,)),
        "w2": w(ks[4], (planes, planes, 3, 3)), "b2": w(ks[5], (planes,)),
        "g2": g(ks[6], planes), "be2": w(ks[7], (planes,)),
        "w3": w(ks[8], (expansion, planes, 1, 1)), "b3": w(ks[9], (expansion,)),
        "g3": g(ks[10], expansion), "be3": w(ks[11], (expansion,)),
        # projection shortcut (used when stride != 1 or in_planes != expansion)
        "ws": w(ks[12], (expansion, in_planes, 1, 1)), "bs": w(ks[13], (expansion,)),
        "gs": g(ks[14], expansion), "bes": w(ks[15], (expansion,)),
    }


def bottleneck_forward(x_nchw, p, in_planes, planes, stride=1,
                       compute_dtype=jnp.bfloat16):
    expansion = 4 * planes
    store_dtype = compute_dtype                      # inter-kernel activations
    x = jnp.transpose(x_nchw, (0, 2, 3, 1)).astype(store_dtype)      # NHWC
    N, H, W, Cin = x.shape
    M1 = N * H * W

    # conv1 (1x1) + bn1 stats  (conv biases dropped: cancelled by training BN)
    w1m = jnp.transpose(p["w1"][:, :, 0, 0])                         # (Cin, planes)
    y1, s1sum, s1ssq = conv1x1_bn_stats(x.reshape(M1, Cin), w1m,
                                        compute_dtype=compute_dtype)
    s1, t1 = _bn_scale_shift(s1sum, s1ssq, M1, p["g1"], p["be1"])

    # conv2 (3x3, pad 1, any stride) fused with bn1-affine + ReLU prologue
    w2m = jnp.transpose(p["w2"], (2, 3, 1, 0)).reshape(3, 3 * planes, planes)
    y2, s2sum, s2ssq, Ho, Wo = conv3x3_fused(
        y1.reshape(N, H, W, planes), s1, t1, w2m, stride=stride,
        compute_dtype=compute_dtype)
    M2 = N * Ho * Wo
    s2, t2 = _bn_scale_shift(s2sum, s2ssq, M2, p["g2"], p["be2"])

    # conv3 (1x1) with fused bn2-affine + ReLU prologue + bn3 stats
    w3m = jnp.transpose(p["w3"][:, :, 0, 0])                         # (planes, exp)
    y3, s3sum, s3ssq = conv1x1_bn_stats(y2, w3m, prologue_scale=s2,
                                        prologue_shift=t2, prologue_relu=True,
                                        compute_dtype=compute_dtype)
    s3, t3 = _bn_scale_shift(s3sum, s3ssq, M2, p["g3"], p["be3"])

    # shortcut + final fused bn3 / bn_s / residual add / ReLU
    if stride != 1 or in_planes != expansion:
        # TODO(synk): fuse the strided shortcut subsample into the conv kernel.
        xs = x[:, ::stride, ::stride, :].reshape(M2, Cin)
        wsm = jnp.transpose(p["ws"][:, :, 0, 0])
        ysc, scsum, scssq = conv1x1_bn_stats(xs, wsm, compute_dtype=compute_dtype)
        ss_, ts_ = _bn_scale_shift(scsum, scssq, M2, p["gs"], p["bes"])
        out = bn_add_relu(y3, s3, t3, ysc, ss_, ts_, out_dtype=store_dtype)
    else:
        out = bn_add_relu(y3, s3, t3, x.reshape(M2, Cin), out_dtype=store_dtype)

    out = out.reshape(N, Ho, Wo, expansion).astype(jnp.float32)
    return jnp.transpose(out, (0, 3, 1, 2))


# ----------------------------- pure-JAX reference ---------------------------

def _ref_forward(x, p, in_planes, planes, stride=1):
    expansion = 4 * planes

    def conv(x, w, b, s=1, pad=0):
        y = jax.lax.conv_general_dilated(
            x, w, (s, s), [(pad, pad), (pad, pad)],
            dimension_numbers=("NCHW", "OIHW", "NCHW"))
        return y + b[None, :, None, None]

    def bn(y, g, be):
        mean = jnp.mean(y, axis=(0, 2, 3), keepdims=True)
        var = jnp.var(y, axis=(0, 2, 3), keepdims=True)
        return (y - mean) / jnp.sqrt(var + EPS) * g[None, :, None, None] \
            + be[None, :, None, None]

    z = jax.nn.relu(bn(conv(x, p["w1"], p["b1"]), p["g1"], p["be1"]))
    z = jax.nn.relu(bn(conv(z, p["w2"], p["b2"], s=stride, pad=1), p["g2"], p["be2"]))
    z = bn(conv(z, p["w3"], p["b3"]), p["g3"], p["be3"])
    if stride != 1 or in_planes != expansion:
        sc = bn(conv(x, p["ws"], p["bs"], s=stride), p["gs"], p["bes"])
    else:
        sc = x
    return jax.nn.relu(z + sc)


# ----------------------------------- main ------------------------------------

def _run_case(in_planes, planes, stride, compute_dtype, rtol, atol):
    key = jax.random.PRNGKey(0)
    kx, kp = jax.random.split(key)
    x = jax.random.normal(kx, (2, in_planes, 16, 16), jnp.float32)   # NCHW
    params = init_params(kp, in_planes, planes)
    out = jax.block_until_ready(
        bottleneck_forward(x, params, in_planes, planes, stride, compute_dtype))
    ref = jax.block_until_ready(_ref_forward(x, params, in_planes, planes, stride))
    ho = (16 + 2 - 3) // stride + 1
    assert out.shape == ref.shape == (2, 4 * planes, ho, ho), (out.shape, ref.shape)
    err = float(jnp.max(jnp.abs(out - ref)))
    assert jnp.allclose(out, ref, rtol=rtol, atol=atol), \
        f"case({in_planes},{planes},{stride},{compute_dtype}): max|err|={err}"


if __name__ == "__main__":
    # f32 MXU operands: tight tolerance against the XLA reference
    _run_case(4, 4, 1, jnp.float32, 2e-3, 2e-3)    # projection shortcut
    _run_case(16, 4, 1, jnp.float32, 2e-3, 2e-3)   # identity shortcut
    _run_case(4, 4, 2, jnp.float32, 2e-3, 2e-3)    # strided (fused in-kernel)
    # bf16 MXU operands + bf16 inter-kernel activations, f32 accumulation/BN math
    _run_case(4, 4, 1, jnp.bfloat16, 5e-2, 5e-2)
    print("KERNEL_OK")
</pallas_src>

<mosaic_0001>
module attributes {stable_mosaic.version = 11 : i64} {
  func.func @_conv1x1_kernel(%arg0: i32, %arg1: i32, %arg2: memref<16x128xf32, #tpu.memory_space<vmem>>, %arg3: memref<128x128xf32, #tpu.memory_space<vmem>>, %arg4: memref<1x128xf32, #tpu.memory_space<vmem>>, %arg5: memref<1x128xf32, #tpu.memory_space<vmem>>, %arg6: memref<16x128xf32, #tpu.memory_space<vmem>>, %arg7: memref<8x128xf32, #tpu.memory_space<vmem>>, %arg8: memref<8x128xf32, #tpu.memory_space<vmem>>) attributes {dimension_semantics = [#tpu.dimension_semantics<parallel>, #tpu.dimension_semantics<arbitrary>], iteration_bounds = array<i64: 1, 1>, scalar_prefetch = 0 : i64, scratch_operands = 0 : i64, tpu.core_type = #tpu.core_type<tc>, window_params = [{transform_indices = @transform_0, window_bounds = array<i64: 16, 128>}, {pipeline_mode = #tpu.pipeline_mode<synchronous>, transform_indices = @transform_1, window_bounds = array<i64: 128, 128>}, {pipeline_mode = #tpu.pipeline_mode<synchronous>, transform_indices = @transform_2, window_bounds = array<i64: 1, 128>}, {pipeline_mode = #tpu.pipeline_mode<synchronous>, transform_indices = @transform_3, window_bounds = array<i64: 1, 128>}, {transform_indices = @transform_4, window_bounds = array<i64: 16, 128>}, {transform_indices = @transform_5, window_bounds = array<i64: 8, 128>}, {transform_indices = @transform_6, window_bounds = array<i64: 8, 128>}]} {
    %c0_i32 = arith.constant 0 : i32
    %0 = arith.cmpi eq, %arg1, %c0_i32 : i32
    %1 = arith.extui %0 : i1 to i32
    %c0_i32_0 = arith.constant 0 : i32
    %2 = arith.cmpi ne, %1, %c0_i32_0 : i32
    scf.if %2 {
      %cst_16 = arith.constant 0.000000e+00 : f32
      %20 = vector.broadcast %cst_16 : f32 to vector<8x128xf32>
      %c0_17 = arith.constant 0 : index
      %c0_18 = arith.constant 0 : index
      %21 = vector.load %arg7[%c0_17, %c0_18] : memref<8x128xf32, #tpu.memory_space<vmem>>, vector<8x128xf32>
      tpu.vector_store %arg7[%c0_17, %c0_18], %20 {strides = array<i32>} : memref<8x128xf32, #tpu.memory_space<vmem>>, vector<8x128xf32>,
      %cst_19 = arith.constant 0.000000e+00 : f32
      %22 = vector.broadcast %cst_19 : f32 to vector<8x128xf32>
      %c0_20 = arith.constant 0 : index
      %c0_21 = arith.constant 0 : index
      %23 = vector.load %arg8[%c0_20, %c0_21] : memref<8x128xf32, #tpu.memory_space<vmem>>, vector<8x128xf32>
      tpu.vector_store %arg8[%c0_20, %c0_21], %22 {strides = array<i32>} : memref<8x128xf32, #tpu.memory_space<vmem>>, vector<8x128xf32>,
    } else {
    }
    %c0 = arith.constant 0 : index
    %c0_1 = arith.constant 0 : index
    %3 = vector.load %arg2[%c0, %c0_1] : memref<16x128xf32, #tpu.memory_space<vmem>>, vector<16x128xf32>
    %c0_2 = arith.constant 0 : index
    %c0_3 = arith.constant 0 : index
    %4 = vector.load %arg3[%c0_2, %c0_3] : memref<128x128xf32, #tpu.memory_space<vmem>>, vector<128x128xf32>
    %cst = arith.constant dense<0.000000e+00> : vector<16x128xf32>
    %5 = tpu.matmul %3, %4, %cst {dimension_numbers = #tpu.dot_dimension_numbers<[1], [0], [0], [1], [0, 0, 1, 1], [], []>} : vector<16x128xf32>, vector<128x128xf32>, vector<16x128xf32> -> vector<16x128xf32>
    %c0_4 = arith.constant 0 : index
    %c0_5 = arith.constant 0 : index
    %6 = vector.load %arg6[%c0_4, %c0_5] : memref<16x128xf32, #tpu.memory_space<vmem>>, vector<16x128xf32>
    tpu.vector_store %arg6[%c0_4, %c0_5], %5 {strides = array<i32>} : memref<16x128xf32, #tpu.memory_space<vmem>>, vector<16x128xf32>,
    %c0_6 = arith.constant 0 : index
    %c0_7 = arith.constant 0 : index
    %7 = vector.load %arg7[%c0_6, %c0_7] : memref<8x128xf32, #tpu.memory_space<vmem>>, vector<8x128xf32>
    %cst_8 = arith.constant dense<0.000000e+00> : vector<128xf32>
    %8 = vector.multi_reduction <add>, %5, %cst_8 [0] : vector<16x128xf32> to vector<128xf32>
    %9 = vector.shape_cast %8 : vector<128xf32> to vector<1x128xf32>
    %10 = vector.broadcast %9 : vector<1x128xf32> to vector<8x128xf32>
    %11 = arith.addf %7, %10 : vector<8x128xf32>
    %c0_9 = arith.constant 0 : index
    %c0_10 = arith.constant 0 : index
    %12 = vector.load %arg7[%c0_9, %c0_10] : memref<8x128xf32, #tpu.memory_space<vmem>>, vector<8x128xf32>
    tpu.vector_store %arg7[%c0_9, %c0_10], %11 {strides = array<i32>} : memref<8x128xf32, #tpu.memory_space<vmem>>, vector<8x128xf32>,
    %c0_11 = arith.constant 0 : index
    %c0_12 = arith.constant 0 : index
    %13 = vector.load %arg8[%c0_11, %c0_12] : memref<8x128xf32, #tpu.memory_space<vmem>>, vector<8x128xf32>
    %14 = arith.mulf %5, %5 : vector<16x128xf32>
    %cst_13 = arith.constant dense<0.000000e+00> : vector<128xf32>
    %15 = vector.multi_reduction <add>, %14, %cst_13 [0] : vector<16x128xf32> to vector<128xf32>
    %16 = vector.shape_cast %15 : vector<128xf32> to vector<1x128xf32>
    %17 = vector.broadcast %16 : vector<1x128xf32> to vector<8x128xf32>
    %18 = arith.addf %13, %17 : vector<8x128xf32>
    %c0_14 = arith.constant 0 : index
    %c0_15 = arith.constant 0 : index
    %19 = vector.load %arg8[%c0_14, %c0_15] : memref<8x128xf32, #tpu.memory_space<vmem>>, vector<8x128xf32>
    tpu.vector_store %arg8[%c0_14, %c0_15], %18 {strides = array<i32>} : memref<8x128xf32, #tpu.memory_space<vmem>>, vector<8x128xf32>,
    return
  }
  func.func @transform_0(%arg0: i32, %arg1: i32) -> (i32, i32) {
    %c1_i32 = arith.constant 1 : i32
    %0 = arith.muli %arg0, %c1_i32 : i32
    %1 = arith.addi %0, %arg1 : i32
    %c0_i32 = arith.constant 0 : i32
    %c0_i32_0 = arith.constant 0 : i32
    return %1, %c0_i32 : i32, i32
  }
  func.func @transform_1(%arg0: i32, %arg1: i32) -> (i32, i32) {
    %c0_i32 = arith.constant 0 : i32
    %c0_i32_0 = arith.constant 0 : i32
    %c0_i32_1 = arith.constant 0 : i32
    return %c0_i32, %c0_i32_0 : i32, i32
  }
  func.func @transform_2(%arg0: i32, %arg1: i32) -> (i32, i32) {
    %c0_i32 = arith.constant 0 : i32
    %c0_i32_0 = arith.constant 0 : i32
    %c0_i32_1 = arith.constant 0 : i32
    return %c0_i32, %c0_i32_0 : i32, i32
  }
  func.func @transform_3(%arg0: i32, %arg1: i32) -> (i32, i32) {
    %c0_i32 = arith.constant 0 : i32
    %c0_i32_0 = arith.constant 0 : i32
    %c0_i32_1 = arith.constant 0 : i32
    return %c0_i32, %c0_i32_0 : i32, i32
  }
  func.func @transform_4(%arg0: i32, %arg1: i32) -> (i32, i32) {
    %c1_i32 = arith.constant 1 : i32
    %0 = arith.muli %arg0, %c1_i32 : i32
    %1 = arith.addi %0, %arg1 : i32
    %c0_i32 = arith.constant 0 : i32
    %c0_i32_0 = arith.constant 0 : i32
    return %1, %c0_i32 : i32, i32
  }
  func.func @transform_5(%arg0: i32, %arg1: i32) -> (i32, i32) {
    %c0_i32 = arith.constant 0 : i32
    %c0_i32_0 = arith.constant 0 : i32
    return %arg0, %c0_i32 : i32, i32
  }
  func.func @transform_6(%arg0: i32, %arg1: i32) -> (i32, i32) {
    %c0_i32 = arith.constant 0 : i32
    %c0_i32_0 = arith.constant 0 : i32
    return %arg0, %c0_i32 : i32, i32
  }
}

</mosaic_0001>

<llo_original>
// kernel: tpu_custom_call.1
$region0: #{tpu_custom_call.1}
  #allocation0 [shape = 'u32[]', space=smem, size = 0x4, offset = 0x4, fixed_abs, tag = 'smem constant byte address 0x4 - core index']
  #allocation1 [shape = 'u32[144,128]{1,0:T(1,128)}', space=vmem, size = 0x12000, scoped, tag = 'internal scratch']
  %s0 = inlined_call_operand.hbm [shape: f32[16,128], index: 0, kind: input, shape index: {}]
  %s1 = inlined_call_operand.hbm [shape: f32[128,128], index: 1, kind: input, shape index: {}]
  %s2 = inlined_call_operand.vmem [shape: f32[1,128], index: 2, kind: input, shape index: {}]
  %s3 = inlined_call_operand.vmem [shape: f32[1,128], index: 3, kind: input, shape index: {}]
  %s4 = inlined_call_operand.hbm [shape: f32[16,128], index: 4, kind: output, shape index: {0}]
  %s5 = inlined_call_operand.hbm [shape: f32[8,128], index: 5, kind: output, shape index: {1}]
  %s6 = inlined_call_operand.hbm [shape: f32[8,128], index: 6, kind: output, shape index: {2}]
  %7 = xla_tuple %s4, %s5, %s6
  %s8 = sld [smem:[#allocation0]]
  $region54: #{tpu_custom_call.1} parent=0
    _
  %s10 = ssub.s32 1, %s8
  %s11 = scalar_select 0, %s10, %s8
  $region1: #{tpu_custom_call.1} parent=0
    #allocation2 [shape = 'u8[8192]{0}', space=vmem, size = 0x2000, scoped, tag = 'input window, operand 0, single buffered']
    #allocation3 [shape = 's32[1]{0}', space=sflag, size = 0x4, scoped, tag = 'scoped memory for tpu_custom_call.1']
    #allocation4 [shape = 's32[1]{0}', space=sflag, size = 0x4, scoped, tag = 'scoped memory for tpu_custom_call.1']
    #allocation5 [shape = 'u8[65536]{0}', space=vmem, size = 0x10000, scoped, tag = 'input window, operand 1, single buffered']
    #allocation6 [shape = 's32[1]{0}', space=sflag, size = 0x4, scoped, tag = 'scoped memory for tpu_custom_call.1']
    #allocation7 [shape = 'u8[8192]{0}', space=vmem, size = 0x2000, scoped, tag = 'output window, operand 0, single buffered']
    #allocation8 [shape = 'u8[4096]{0}', space=vmem, size = 0x1000, scoped, tag = 'output window, operand 1, single buffered']
    #allocation9 [shape = 's32[1]{0}', space=sflag, size = 0x4, scoped, tag = 'scoped memory for tpu_custom_call.1']
    #allocation10 [shape = 'u8[4096]{0}', space=vmem, size = 0x1000, scoped, tag = 'output window, operand 2, single buffered']
    %12 = vsyncpa [#allocation3], 0
    %13 = vsyncpa [#allocation6], 0
    %14 = vsyncpa [#allocation4], 0
    %15 = vsyncpa [#allocation9], 0
    // Predicated region
    $region2: #{tpu_custom_call.1} parent=1 // pred_check
      _
    $region3: #{tpu_custom_call.1} parent=1 // pred_check_branch
      %17 = sbr.rel (0) target = $region5
    $region4: #{tpu_custom_call.1} parent=1 // pred_region
      %s18 = sadd.s32 0, 0
      %s19 = smul.u32 2, %s18
      %s21 = ssub.s32 256, 256
      %22 = vsyncadd [#allocation3], %s21
      %s23 = smul.addr %s19, 128
      %s24 = scalar_lea.hbm %s0, %s23
      %s25 = sshll.u32 [#allocation2], 4
      %s26 = int_to_ptr.vmem [resolvable:$true] %s25
      %31 = dma.hbm_to_vmem [thread:$0]  %s24, 256, %s26, [#allocation3], 128, 128, 8
    $region5: #{tpu_custom_call.1} parent=1 // pred_fallthru
      _
    // Predicated region
    $region6: #{tpu_custom_call.1} parent=1 // pred_check
      _
    $region7: #{tpu_custom_call.1} parent=1 // pred_check_branch
      %33 = sbr.rel (0) target = $region9
    $region8: #{tpu_custom_call.1} parent=1 // pred_region
      %s35 = ssub.s32 2048, 2048
      %36 = vsyncadd [#allocation6], %s35
      %s37 = sshll.u32 [#allocation5], 4
      %s38 = int_to_ptr.vmem [resolvable:$true] %s37
      %43 = dma.hbm_to_vmem [thread:$0]  %s1, 2048, %s38, [#allocation6], 128, 128, 8
    $region9: #{tpu_custom_call.1} parent=1 // pred_fallthru
      _
    // Predicated region
    $region10: #{tpu_custom_call.1} parent=1 // pred_check
      _
    $region11: #{tpu_custom_call.1} parent=1 // pred_check_branch
      %45 = sbr.rel (0) target = $region13
    $region12: #{tpu_custom_call.1} parent=1 // pred_region
      _
    $region13: #{tpu_custom_call.1} parent=1 // pred_fallthru
      _
    // Predicated region
    $region14: #{tpu_custom_call.1} parent=1 // pred_check
      _
    $region15: #{tpu_custom_call.1} parent=1 // pred_check_branch
      %47 = sbr.rel (0) target = $region17
    $region16: #{tpu_custom_call.1} parent=1 // pred_region
      _
    $region17: #{tpu_custom_call.1} parent=1 // pred_fallthru
      _
    // Predicated region
    $region18: #{tpu_custom_call.1} parent=1 // pred_check
      _
    $region19: #{tpu_custom_call.1} parent=1 // pred_check_branch
      %49 = sbr.rel (0) target = $region21
    $region20: #{tpu_custom_call.1} parent=1 // pred_region
      %50 = dma.done [#allocation3], 256
    $region21: #{tpu_custom_call.1} parent=1 // pred_fallthru
      _
    // Predicated region
    $region22: #{tpu_custom_call.1} parent=1 // pred_check
      _
    $region23: #{tpu_custom_call.1} parent=1 // pred_check_branch
      %52 = sbr.rel (0) target = $region25
    $region24: #{tpu_custom_call.1} parent=1 // pred_region
      %53 = dma.done [#allocation6], 2048
    $region25: #{tpu_custom_call.1} parent=1 // pred_fallthru
      _
    %s54 = sadd.s32 0, 0
    %s55 = smul.u32 2, %s54
    %s56 = sadd.s32 0, 0
    %s57 = smul.u32 2, %s56
    %p58 = scmp.eq.s32.totalorder 0, 0
    // Predicated region
    $region26: #{tpu_custom_call.1} parent=1 // pred_check
      %p59 = pneg %p58
    $region27: #{tpu_custom_call.1} parent=1 // pred_check_branch
      %61 = sbr.rel (%p59) target = $region29
    $region28: #{tpu_custom_call.1} parent=1 // pred_region
      %62 = vst [vmem:[#allocation8] sm:$0xff] 0.0
      %63 = vst [vmem:[#allocation10] sm:$0xff] 0.0
    $region29: #{tpu_custom_call.1} parent=1 // pred_fallthru
      _
    %v64 = vld [vmem:[#allocation2] sm:$0xff]
    %v65 = vld [vmem:[#allocation2 + $0x8] sm:$0xff]
    %v66 = vld [vmem:[#allocation5] sm:$0xff]
    %v67 = vld [vmem:[#allocation5 + $0x8] sm:$0xff]
    %v68 = vld [vmem:[#allocation5 + $0x10] sm:$0xff]
    %v69 = vld [vmem:[#allocation5 + $0x18] sm:$0xff]
    %v70 = vld [vmem:[#allocation5 + $0x20] sm:$0xff]
    %v71 = vld [vmem:[#allocation5 + $0x28] sm:$0xff]
    %v72 = vld [vmem:[#allocation5 + $0x30] sm:$0xff]
    %v73 = vld [vmem:[#allocation5 + $0x38] sm:$0xff]
    %v74 = vld [vmem:[#allocation5 + $0x40] sm:$0xff]
    %v75 = vld [vmem:[#allocation5 + $0x48] sm:$0xff]
    %v76 = vld [vmem:[#allocation5 + $0x50] sm:$0xff]
    %v77 = vld [vmem:[#allocation5 + $0x58] sm:$0xff]
    %v78 = vld [vmem:[#allocation5 + $0x60] sm:$0xff]
    %v79 = vld [vmem:[#allocation5 + $0x68] sm:$0xff]
    %v80 = vld [vmem:[#allocation5 + $0x70] sm:$0xff]
    %v81 = vld [vmem:[#allocation5 + $0x78] sm:$0xff]
    %82 = vmatprep.subr.mxu0 0.0
    %83 = vmatpush1.msra.mxu0 %v66
    %84 = vmatprep.subr.mxu0 0.0
    %85 = vmatpush1.msra.mxu0 %v67
    %86 = vmatprep.subr.mxu0 0.0
    %87 = vmatpush1.msra.mxu0 %v68
    %88 = vmatprep.subr.mxu0 0.0
    %89 = vmatpush1.msra.mxu0 %v69
    %90 = vmatprep.subr.mxu0 0.0
    %91 = vmatpush1.msra.mxu0 %v70
    %92 = vmatprep.subr.mxu0 0.0
    %93 = vmatpush1.msra.mxu0 %v71
    %94 = vmatprep.subr.mxu0 0.0
    %95 = vmatpush1.msra.mxu0 %v72
    %96 = vmatprep.subr.mxu0 0.0
    %97 = vmatpush1.msra.mxu0 %v73
    %98 = vmatprep.subr.mxu0 0.0
    %99 = vmatpush1.msra.mxu0 %v74
    %100 = vmatprep.subr.mxu0 0.0
    %101 = vmatpush1.msra.mxu0 %v75
    %102 = vmatprep.subr.mxu0 0.0
    %103 = vmatpush1.msra.mxu0 %v76
    %104 = vmatprep.subr.mxu0 0.0
    %105 = vmatpush1.msra.mxu0 %v77
    %106 = vmatprep.subr.mxu0 0.0
    %107 = vmatpush1.msra.mxu0 %v78
    %108 = vmatprep.subr.mxu0 0.0
    %109 = vmatpush1.msra.mxu0 %v79
    %110 = vmatprep.subr.mxu0 0.0
    %111 = vmatpush1.msra.mxu0 %v80
    %112 = vmatprep.subr.mxu0 0.0
    %113 = vmatpush1.msra.mxu0 %v81
    %114 = vmatprep.subr.mxu0 0.0
    %115 = vmatpush1.msra.mxu0 0.0
    %116 = vmatprep.subr.mxu0 0.0
    %117 = vmatpush1.msra.mxu0 0.0
    %118 = vmatprep.subr.mxu0 0.0
    %119 = vmatpush1.msra.mxu0 0.0
    %120 = vmatprep.subr.mxu0 0.0
    %121 = vmatpush1.msra.mxu0 0.0
    %122 = vmatprep.subr.mxu0 0.0
    %123 = vmatpush1.msra.mxu0 0.0
    %124 = vmatprep.subr.mxu0 0.0
    %125 = vmatpush1.msra.mxu0 0.0
    %126 = vmatprep.subr.mxu0 0.0
    %127 = vmatpush1.msra.mxu0 0.0
    %128 = vmatprep.subr.mxu0 0.0
    %129 = vmatpush1.msra.mxu0 0.0
    %130 = vmatprep.subr.mxu0 0.0
    %131 = vmatpush1.msra.mxu0 0.0
    %132 = vmatprep.subr.mxu0 0.0
    %133 = vmatpush1.msra.mxu0 0.0
    %134 = vmatprep.subr.mxu0 0.0
    %135 = vmatpush1.msra.mxu0 0.0
    %136 = vmatprep.subr.mxu0 0.0
    %137 = vmatpush1.msra.mxu0 0.0
    %138 = vmatprep.subr.mxu0 0.0
    %139 = vmatpush1.msra.mxu0 0.0
    %140 = vmatprep.subr.mxu0 0.0
    %141 = vmatpush1.msra.mxu0 0.0
    %142 = vmatprep.subr.mxu0 0.0
    %143 = vmatpush1.msra.mxu0 0.0
    %144 = vmatprep.subr.mxu0 0.0
    %145 = vmatpush1.msra.mxu0 0.0
    %146 = vmatprep.mubr.f32.mxu0 0.0
    %147 = vmatmul.mubr.f32.gmra.mrb[0].mxu0 %v64
    %v148 = vpop.f32.mrb[0].mxu0
    %v149 = vadd.f32 0.0, %v148
    %v150 = vpop.f32.mrb[0].mxu0
    %151 = vmatprep.mubr.f32.mxu0 0.0
    %152 = vmatmul.mubr.f32.gmra.mrb[0].mxu0 %v65
    %v153 = vpop.f32.mrb[0].mxu0
    %v154 = vadd.f32 0.0, %v153
    %v155 = vpop.f32.mrb[0].mxu0
    %156 = vdwg.mxu0
    %157 = vst [vmem:[#allocation7] sm:$0xff] %v149
    %158 = vst [vmem:[#allocation7 + $0x8] sm:$0xff] %v154
    %v159 = vld [vmem:[#allocation8] sm:$0xff]
    %v160 = vadd.f32 %v149, %v154
    %v161 = vrot.slane %v160, 4
    %v162 = vadd.f32 %v160, %v161
    %v163 = vrot.slane %v162, 2
    %v164 = vadd.f32 %v162, %v163
    %v165 = vrot.slane %v164, 1
    %v166 = vadd.f32 %v164, %v165
    %v167 = vadd.f32 %v159, %v166
    %168 = vst [vmem:[#allocation8] sm:$0xff] %v167
    %v169 = vld [vmem:[#allocation10] sm:$0xff]
    %v170 = vmul.f32 %v149, %v149
    %v171 = vmul.f32 %v154, %v154
    %v172 = vadd.f32 %v170, %v171
    %v173 = vrot.slane %v172, 4
    %v174 = vadd.f32 %v172, %v173
    %v175 = vrot.slane %v174, 2
    %v176 = vadd.f32 %v174, %v175
    %v177 = vrot.slane %v176, 1
    %v178 = vadd.f32 %v176, %v177
    %v179 = vadd.f32 %v169, %v178
    %180 = vst [vmem:[#allocation10] sm:$0xff] %v179
    // Predicated region
    $region30: #{tpu_custom_call.1} parent=1 // pred_check
      _
    $region31: #{tpu_custom_call.1} parent=1 // pred_check_branch
      %182 = sbr.rel (0) target = $region33
    $region32: #{tpu_custom_call.1} parent=1 // pred_region
      %s183 = sadd.s32 0, 0
      %s184 = smul.u32 2, %s183
      %s186 = ssub.s32 256, 256
      %187 = vsyncadd [#allocation4], %s186
      %s188 = smul.addr %s184, 128
      %s189 = scalar_lea.hbm %s4, %s188
      %s190 = sshll.u32 [#allocation7], 4
      %s191 = int_to_ptr.vmem [resolvable:$true] %s190
      %196 = dma.vmem_to_hbm [thread:$0]  %s191, 256, %s189, [#allocation4], 128, 128, 8
    $region33: #{tpu_custom_call.1} parent=1 // pred_fallthru
      _
    // Predicated region
    $region34: #{tpu_custom_call.1} parent=1 // pred_check
      _
    $region35: #{tpu_custom_call.1} parent=1 // pred_check_branch
      %198 = sbr.rel (0) target = $region37
    $region36: #{tpu_custom_call.1} parent=1 // pred_region
      %s200 = ssub.s32 128, 128
      %201 = vsyncadd [#allocation9], %s200
      %s203 = sshll.u32 [#allocation8], 4
      %s204 = int_to_ptr.vmem [resolvable:$true] %s203
      %206 = dma.vmem_to_hbm [thread:$0]  %s204, 128, %s5, [#allocation9]
    $region37: #{tpu_custom_call.1} parent=1 // pred_fallthru
      _
    // Predicated region
    $region38: #{tpu_custom_call.1} parent=1 // pred_check
      _
    $region39: #{tpu_custom_call.1} parent=1 // pred_check_branch
      %208 = sbr.rel (0) target = $region41
    $region40: #{tpu_custom_call.1} parent=1 // pred_region
      %s210 = ssub.s32 128, 128
      %211 = vsyncadd [#allocation9], %s210
      %s213 = sshll.u32 [#allocation10], 4
      %s214 = int_to_ptr.vmem [resolvable:$true] %s213
      %216 = dma.vmem_to_hbm [thread:$0]  %s214, 128, %s6, [#allocation9]
    $region41: #{tpu_custom_call.1} parent=1 // pred_fallthru
      _
    // Predicated region
    $region42: #{tpu_custom_call.1} parent=1 // pred_check
      _
    $region43: #{tpu_custom_call.1} parent=1 // pred_check_branch
      %218 = sbr.rel (0) target = $region45
    $region44: #{tpu_custom_call.1} parent=1 // pred_region
      %219 = dma.done [#allocation4], 256
    $region45: #{tpu_custom_call.1} parent=1 // pred_fallthru
      _
    // Predicated region
    $region46: #{tpu_custom_call.1} parent=1 // pred_check
      _
    $region47: #{tpu_custom_call.1} parent=1 // pred_check_branch
      %221 = sbr.rel (0) target = $region49
    $region48: #{tpu_custom_call.1} parent=1 // pred_region
      %222 = dma.done [#allocation9], 128
    $region49: #{tpu_custom_call.1} parent=1 // pred_fallthru
      _
    // Predicated region
    $region50: #{tpu_custom_call.1} parent=1 // pred_check
      _
    $region51: #{tpu_custom_call.1} parent=1 // pred_check_branch
      %224 = sbr.rel (0) target = $region53
    $region52: #{tpu_custom_call.1} parent=1 // pred_region
      %225 = dma.done [#allocation9], 128
    $region53: #{tpu_custom_call.1} parent=1 // pred_fallthru
      _
    %226 = vsyncpa [#allocation3], 1
    %227 = vsyncpa [#allocation6], 1
    %228 = vsyncpa [#allocation4], 1
    %229 = vsyncpa [#allocation9], 1

</llo_original>
